<compile_context>
chip_gen: v7x
topology: tpu7x:2x2x1
jax: 0.10.0
libtpu: 0.0.40
codegen_flags: <defaults>
</compile_context>

<pallas_src>
import jax
import jax.numpy as jnp
from jax import lax
from jax.experimental import pallas as pl
from jax.experimental.pallas import tpu as pltpu

BN_EPS = 1e-5


# -----------------------------------------------------------------------------
# Fused conv (+ folded BN affine) (+ residual add) (+ ReLU) as one Pallas GEMM.
# -----------------------------------------------------------------------------
def _make_fused_kernel(apply_relu: bool, add_residual: bool):
    if add_residual:
        def kernel(w_ref, p_ref, scale_ref, shift_ref, res_ref, o_ref):
            y = jnp.dot(w_ref[...], p_ref[...], preferred_element_type=jnp.float32)
            y = y * scale_ref[...] + shift_ref[...]
            y = y + res_ref[...]
            if apply_relu:
                y = jnp.maximum(y, 0.0)
            o_ref[...] = y.astype(o_ref.dtype)
    else:
        def kernel(w_ref, p_ref, scale_ref, shift_ref, o_ref):
            y = jnp.dot(w_ref[...], p_ref[...], preferred_element_type=jnp.float32)
            y = y * scale_ref[...] + shift_ref[...]
            if apply_relu:
                y = jnp.maximum(y, 0.0)
            o_ref[...] = y.astype(o_ref.dtype)
    return kernel


def _im2col(x, ksize, stride, pad):
    """(N, C, H, W) -> patches (C*K*K, N*H_out*W_out). Pure layout plumbing (XLA side)."""
    n, c, h, w = x.shape
    h_out = (h + 2 * pad - ksize) // stride + 1
    w_out = (w + 2 * pad - ksize) // stride + 1
    xp = jnp.pad(x, ((0, 0), (0, 0), (pad, pad), (pad, pad)))
    taps = []
    for kh in range(ksize):
        for kw in range(ksize):
            taps.append(xp[:, :, kh:kh + stride * h_out:stride,
                              kw:kw + stride * w_out:stride])    # (N, C, Ho, Wo)
    p = jnp.stack(taps, axis=0)                                   # (K*K, N, C, Ho, Wo)
    p = p.reshape(ksize, ksize, n, c, h_out, w_out)
    p = p.transpose(3, 0, 1, 2, 4, 5)                             # (C, K, K, N, Ho, Wo)
    p = p.reshape(c * ksize * ksize, n * h_out * w_out)           # rows match w.reshape(C_out, -1)
    return p, h_out, w_out


def fused_conv_bn_act(x, w, scale, shift, *, stride, padding, relu, residual=None):
    """Conv2d(bias=False) + per-channel affine (folded BN) [+ residual] [+ ReLU] in one kernel."""
    n, c_in, _, _ = x.shape
    c_out, c_in_w, ksize, ksize2 = w.shape
    assert c_in_w == c_in and ksize == ksize2

    patches, h_out, w_out = _im2col(x, ksize, stride, padding)
    kdim, ncol = patches.shape                  # ncol = N*H_out*W_out  (lane-dense columns)

    # Pad contraction dim to a multiple of 8 (sublane) so blocks tile cleanly; zeros are inert.
    kpad = (-kdim) % 8
    if kpad:
        patches = jnp.pad(patches, ((0, kpad), (0, 0)))
    w2d = jnp.pad(w.reshape(c_out, kdim), ((0, 0), (0, kpad)))
    kdim_p = kdim + kpad

    scale2 = jnp.asarray(scale, jnp.float32).reshape(c_out, 1)
    shift2 = jnp.asarray(shift, jnp.float32).reshape(c_out, 1)

    # Column tile: lane-aligned (multiple of 128) when it divides ncol, otherwise one full-width
    # block (full-dim exception). Single "parallel" grid axis over output-column tiles.
    tn = ncol
    for cand in (512, 256, 128):
        if ncol % cand == 0:
            tn = cand
            break
    grid = (ncol // tn,)

    in_specs = [
        pl.BlockSpec((c_out, kdim_p), lambda j: (0, 0)),   # weights, resident every step
        pl.BlockSpec((kdim_p, tn), lambda j: (0, j)),      # patch columns for this tile
        pl.BlockSpec((c_out, 1), lambda j: (0, 0)),        # folded BN scale
        pl.BlockSpec((c_out, 1), lambda j: (0, 0)),        # folded BN shift
    ]
    args = [w2d, patches, scale2, shift2]

    if residual is not None:
        res2d = residual.transpose(1, 0, 2, 3).reshape(c_out, ncol)
        in_specs.append(pl.BlockSpec((c_out, tn), lambda j: (0, j)))
        args.append(res2d)

    n_bytes = 4 * (w2d.size + patches.size + scale2.size + shift2.size
                   + c_out * ncol + (c_out * ncol if residual is not None else 0))
    cost = pl.CostEstimate(flops=int(2 * c_out * kdim_p * ncol),
                           transcendentals=0,
                           bytes_accessed=int(n_bytes))

    out2d = pl.pallas_call(
        _make_fused_kernel(relu, residual is not None),
        out_shape=jax.ShapeDtypeStruct((c_out, ncol), jnp.float32),
        grid=grid,
        in_specs=in_specs,
        out_specs=pl.BlockSpec((c_out, tn), lambda j: (0, j)),
        compiler_params=pltpu.CompilerParams(dimension_semantics=("parallel",)),
        cost_estimate=cost,
    )(*args)

    # Back to NCHW for the next layer (wrapper-side layout only).
    return out2d.reshape(c_out, n, h_out, w_out).transpose(1, 0, 2, 3)


# -----------------------------------------------------------------------------
# ResNet forward built from the fused kernel.
# -----------------------------------------------------------------------------
def _fold_bn(bn):
    # TODO(synk): BatchNorm2d is applied with inference semantics (running stats folded into a
    # per-channel scale/shift fused in the conv epilogue); train-mode batch statistics are not
    # computed in-kernel.
    scale = bn["gamma"] / jnp.sqrt(bn["var"] + BN_EPS)
    shift = bn["beta"] - bn["mean"] * scale
    return scale, shift


def resnet_forward(x, params, *, conv1_stride):
    """Pallas forward of ResNet: conv1 -> bn1 -> relu -> layers_2n -> conv2."""
    scale, shift = _fold_bn(params["bn1"])
    h = fused_conv_bn_act(x, params["conv1_w"], scale, shift,
                          stride=conv1_stride, padding=2, relu=True)

    # TODO(synk): `block` is injected into ResNet and not defined in the given spec; assumed to be
    # the standard ResidualBlock from the same models.py (conv3x3-bn-relu-conv3x3-bn + identity
    # shortcut + relu). Its IdentityPadding shortcut is never instantiated here because
    # get_layers is always called with stride=1 (down_sample=False).
    for blk in params["blocks"]:
        shortcut = h
        s1, b1 = _fold_bn(blk["bn1"])
        h1 = fused_conv_bn_act(h, blk["conv1_w"], s1, b1, stride=1, padding=1, relu=True)
        s2, b2 = _fold_bn(blk["bn2"])
        h = fused_conv_bn_act(h1, blk["conv2_w"], s2, b2, stride=1, padding=1,
                              relu=True, residual=shortcut)

    c_final = params["conv2_w"].shape[0]
    ones = jnp.ones((c_final,), jnp.float32)
    zeros = jnp.zeros((c_final,), jnp.float32)
    return fused_conv_bn_act(h, params["conv2_w"], ones, zeros,
                             stride=1, padding=1, relu=False)


# -----------------------------------------------------------------------------
# Pure-JAX reference (independent path via lax.conv) and parameter init.
# -----------------------------------------------------------------------------
def _conv_ref(x, w, stride, pad):
    return lax.conv_general_dilated(
        x, w, window_strides=(stride, stride),
        padding=((pad, pad), (pad, pad)),
        dimension_numbers=("NCHW", "OIHW", "NCHW"),
        precision=lax.Precision.HIGHEST)


def _bn_ref(x, bn):
    scale, shift = _fold_bn(bn)
    return x * scale[None, :, None, None] + shift[None, :, None, None]


def resnet_forward_ref(x, params, *, conv1_stride):
    h = jax.nn.relu(_bn_ref(_conv_ref(x, params["conv1_w"], conv1_stride, 2), params["bn1"]))
    for blk in params["blocks"]:
        shortcut = h
        h1 = jax.nn.relu(_bn_ref(_conv_ref(h, blk["conv1_w"], 1, 1), blk["bn1"]))
        h2 = _bn_ref(_conv_ref(h1, blk["conv2_w"], 1, 1), blk["bn2"])
        h = jax.nn.relu(h2 + shortcut)
    return _conv_ref(h, params["conv2_w"], 1, 1)


def init_params(key, num_layers, final_channels):
    def conv_w(k, c_out, c_in, ksize):
        fan_in = c_in * ksize * ksize
        return jax.random.normal(k, (c_out, c_in, ksize, ksize), jnp.float32) * (2.0 / fan_in) ** 0.5

    def bn_p(k, c):
        k1, k2, k3, k4 = jax.random.split(k, 4)
        return {
            "gamma": 1.0 + 0.1 * jax.random.normal(k1, (c,), jnp.float32),
            "beta": 0.1 * jax.random.normal(k2, (c,), jnp.float32),
            "mean": 0.1 * jax.random.normal(k3, (c,), jnp.float32),
            "var": jax.random.uniform(k4, (c,), jnp.float32, minval=0.8, maxval=1.2),
        }

    keys = jax.random.split(key, 3 + 4 * num_layers)
    params = {
        "conv1_w": conv_w(keys[0], 32, 1, 5),
        "bn1": bn_p(keys[1], 32),
        "conv2_w": conv_w(keys[2], final_channels, 32, 3),
        "blocks": [],
    }
    for i in range(num_layers):
        k0, k1, k2, k3 = keys[3 + 4 * i: 7 + 4 * i]
        params["blocks"].append({
            "conv1_w": conv_w(k0, 32, 32, 3),
            "bn1": bn_p(k1, 32),
            "conv2_w": conv_w(k2, 32, 32, 3),
            "bn2": bn_p(k3, 32),
        })
    return params


if __name__ == "__main__":
    # ResNet(num_layers=2, block=ResidualBlock, net_num=1):
    #   net_num == 1 -> conv1 stride 2;  net_num != 4 -> final conv2 has 32 output channels.
    num_layers = 2
    net_num = 1
    conv1_stride = 2 if net_num == 1 else 1
    final_channels = 1 if net_num == 4 else 32

    key = jax.random.PRNGKey(0)
    kx, kp = jax.random.split(key)
    x = jax.random.normal(kx, (2, 1, 16, 16), dtype=jnp.float32)   # (N=2, C_in=1, 16x16)
    params = init_params(kp, num_layers, final_channels)

    y = resnet_forward(x, params, conv1_stride=conv1_stride)
    y = jax.block_until_ready(y)

    y_ref = resnet_forward_ref(x, params, conv1_stride=conv1_stride)
    assert y.shape == y_ref.shape == (2, final_channels, 8, 8), (y.shape, y_ref.shape)
    max_err = float(jnp.max(jnp.abs(y - y_ref)))
    assert jnp.allclose(y, y_ref, atol=5e-2, rtol=5e-2), f"mismatch vs reference (max abs err {max_err})"

    print("KERNEL_OK")
</pallas_src>

<mosaic_0001>
module attributes {stable_mosaic.version = 11 : i64} {
  func.func @kernel(%arg0: i32, %arg1: memref<32x32xf32, #tpu.memory_space<vmem>>, %arg2: memref<32x128xf32, #tpu.memory_space<vmem>>, %arg3: memref<32x1xf32, #tpu.memory_space<vmem>>, %arg4: memref<32x1xf32, #tpu.memory_space<vmem>>, %arg5: memref<32x128xf32, #tpu.memory_space<vmem>>) attributes {dimension_semantics = [#tpu.dimension_semantics<parallel>], iteration_bounds = array<i64: 1>, scalar_prefetch = 0 : i64, scratch_operands = 0 : i64, tpu.core_type = #tpu.core_type<tc>, window_params = [{pipeline_mode = #tpu.pipeline_mode<synchronous>, transform_indices = @transform_0, window_bounds = array<i64: 32, 32>}, {transform_indices = @transform_1, window_bounds = array<i64: 32, 128>}, {pipeline_mode = #tpu.pipeline_mode<synchronous>, transform_indices = @transform_2, window_bounds = array<i64: 32, 1>}, {pipeline_mode = #tpu.pipeline_mode<synchronous>, transform_indices = @transform_3, window_bounds = array<i64: 32, 1>}, {transform_indices = @transform_4, window_bounds = array<i64: 32, 128>}]} {
    %c0 = arith.constant 0 : index
    %c0_0 = arith.constant 0 : index
    %0 = vector.load %arg1[%c0, %c0_0] : memref<32x32xf32, #tpu.memory_space<vmem>>, vector<32x32xf32>
    %c0_1 = arith.constant 0 : index
    %c0_2 = arith.constant 0 : index
    %1 = vector.load %arg2[%c0_1, %c0_2] : memref<32x128xf32, #tpu.memory_space<vmem>>, vector<32x128xf32>
    %cst = arith.constant dense<0.000000e+00> : vector<32x128xf32>
    %2 = tpu.matmul %0, %1, %cst {dimension_numbers = #tpu.dot_dimension_numbers<[1], [0], [0], [1], [0, 0, 1, 1], [], []>} : vector<32x32xf32>, vector<32x128xf32>, vector<32x128xf32> -> vector<32x128xf32>
    %c0_3 = arith.constant 0 : index
    %c0_4 = arith.constant 0 : index
    %3 = vector.load %arg3[%c0_3, %c0_4] : memref<32x1xf32, #tpu.memory_space<vmem>>, vector<32x1xf32>
    %4 = vector.broadcast %3 : vector<32x1xf32> to vector<32x128xf32>
    %5 = arith.mulf %2, %4 : vector<32x128xf32>
    %c0_5 = arith.constant 0 : index
    %c0_6 = arith.constant 0 : index
    %6 = vector.load %arg4[%c0_5, %c0_6] : memref<32x1xf32, #tpu.memory_space<vmem>>, vector<32x1xf32>
    %7 = vector.broadcast %6 : vector<32x1xf32> to vector<32x128xf32>
    %8 = arith.addf %5, %7 : vector<32x128xf32>
    %cst_7 = arith.constant 0.000000e+00 : f32
    %9 = vector.broadcast %cst_7 : f32 to vector<32x128xf32>
    %10 = arith.maximumf %8, %9 : vector<32x128xf32>
    %c0_8 = arith.constant 0 : index
    %c0_9 = arith.constant 0 : index
    %11 = vector.load %arg5[%c0_8, %c0_9] : memref<32x128xf32, #tpu.memory_space<vmem>>, vector<32x128xf32>
    tpu.vector_store %arg5[%c0_8, %c0_9], %10 {strides = array<i32>} : memref<32x128xf32, #tpu.memory_space<vmem>>, vector<32x128xf32>,
    return
  }
  func.func @transform_0(%arg0: i32) -> (i32, i32) {
    %c0_i32 = arith.constant 0 : i32
    %c0_i32_0 = arith.constant 0 : i32
    %c0_i32_1 = arith.constant 0 : i32
    return %c0_i32, %c0_i32_0 : i32, i32
  }
  func.func @transform_1(%arg0: i32) -> (i32, i32) {
    %c0_i32 = arith.constant 0 : i32
    %c0_i32_0 = arith.constant 0 : i32
    return %c0_i32, %arg0 : i32, i32
  }
  func.func @transform_2(%arg0: i32) -> (i32, i32) {
    %c0_i32 = arith.constant 0 : i32
    %c0_i32_0 = arith.constant 0 : i32
    %c0_i32_1 = arith.constant 0 : i32
    return %c0_i32, %c0_i32_0 : i32, i32
  }
  func.func @transform_3(%arg0: i32) -> (i32, i32) {
    %c0_i32 = arith.constant 0 : i32
    %c0_i32_0 = arith.constant 0 : i32
    %c0_i32_1 = arith.constant 0 : i32
    return %c0_i32, %c0_i32_0 : i32, i32
  }
  func.func @transform_4(%arg0: i32) -> (i32, i32) {
    %c0_i32 = arith.constant 0 : i32
    %c0_i32_0 = arith.constant 0 : i32
    return %c0_i32, %arg0 : i32, i32
  }
}

</mosaic_0001>

<llo_original>
// kernel: tpu_custom_call.1
$region0: #{tpu_custom_call.1}
  #allocation0 [shape = 'u32[]', space=smem, size = 0x4, offset = 0x4, fixed_abs, tag = 'smem constant byte address 0x4 - core index']
  #allocation1 [shape = 'u32[144,128]{1,0:T(1,128)}', space=vmem, size = 0x12000, scoped, tag = 'internal scratch']
  %s0 = inlined_call_operand.vmem [shape: f32[32,32], index: 0, kind: input, shape index: {}]
  %s1 = inlined_call_operand.vmem [shape: f32[32,128], index: 1, kind: input, shape index: {}]
  %s2 = inlined_call_operand.vmem [shape: f32[32,1], index: 2, kind: input, shape index: {}]
  %s3 = inlined_call_operand.vmem [shape: f32[32,1], index: 3, kind: input, shape index: {}]
  %s4 = inlined_call_operand.hbm [shape: f32[32,128], index: 4, kind: output, shape index: {}]
  %s5 = sld [smem:[#allocation0]]
  $region26: #{tpu_custom_call.1} parent=0
    _
  %s7 = ssub.s32 1, %s5
  %s8 = scalar_select 0, %s7, %s5
  $region1: #{tpu_custom_call.1} parent=0
    #allocation2 [shape = 'u8[16384]{0}', space=vmem, size = 0x4000, scoped, tag = 'output window, operand 0, single buffered']
    #allocation3 [shape = 's32[1]{0}', space=sflag, size = 0x4, scoped, tag = 'scoped memory for tpu_custom_call.1']
    %9 = vsyncpa [#allocation3], 0
    // Predicated region
    $region2: #{tpu_custom_call.1} parent=1 // pred_check
      _
    $region3: #{tpu_custom_call.1} parent=1 // pred_check_branch
      %11 = sbr.rel (0) target = $region5
    $region4: #{tpu_custom_call.1} parent=1 // pred_region
      _
    $region5: #{tpu_custom_call.1} parent=1 // pred_fallthru
      _
    // Predicated region
    $region6: #{tpu_custom_call.1} parent=1 // pred_check
      _
    $region7: #{tpu_custom_call.1} parent=1 // pred_check_branch
      %13 = sbr.rel (0) target = $region9
    $region8: #{tpu_custom_call.1} parent=1 // pred_region
      _
    $region9: #{tpu_custom_call.1} parent=1 // pred_fallthru
      _
    // Predicated region
    $region10: #{tpu_custom_call.1} parent=1 // pred_check
      _
    $region11: #{tpu_custom_call.1} parent=1 // pred_check_branch
      %15 = sbr.rel (0) target = $region13
    $region12: #{tpu_custom_call.1} parent=1 // pred_region
      _
    $region13: #{tpu_custom_call.1} parent=1 // pred_fallthru
      _
    // Predicated region
    $region14: #{tpu_custom_call.1} parent=1 // pred_check
      _
    $region15: #{tpu_custom_call.1} parent=1 // pred_check_branch
      %17 = sbr.rel (0) target = $region17
    $region16: #{tpu_custom_call.1} parent=1 // pred_region
      _
    $region17: #{tpu_custom_call.1} parent=1 // pred_fallthru
      _
    %v18 = vld [vmem:[%s0] sm:$0xff]
    %v19 = vld [vmem:[%s0 + $0x8] sm:$0xff]
    %v20 = vld [vmem:[%s0 + $0x10] sm:$0xff]
    %v21 = vld [vmem:[%s0 + $0x18] sm:$0xff]
    %v22 = vld [vmem:[%s1] sm:$0xff]
    %v23 = vld [vmem:[%s1 + $0x8] sm:$0xff]
    %v24 = vld [vmem:[%s1 + $0x10] sm:$0xff]
    %v25 = vld [vmem:[%s1 + $0x18] sm:$0xff]
    %vm26 = vcmask 261120
    %v28 = vsel %vm26, %v18, 0
    %v31 = vsel %vm26, %v19, 0
    %v34 = vsel %vm26, %v20, 0
    %v37 = vsel %vm26, %v21, 0
    %39 = vmatprep.subr.mxu0 0.0
    %40 = vmatpush1.msra.mxu0 %v22
    %41 = vmatprep.subr.mxu0 0.0
    %42 = vmatpush1.msra.mxu0 %v23
    %43 = vmatprep.subr.mxu0 0.0
    %44 = vmatpush1.msra.mxu0 %v24
    %45 = vmatprep.subr.mxu0 0.0
    %46 = vmatpush1.msra.mxu0 %v25
    %47 = vmatprep.subr.mxu0 0.0
    %48 = vmatpush1.msra.mxu0 0.0
    %49 = vmatprep.subr.mxu0 0.0
    %50 = vmatpush1.msra.mxu0 0.0
    %51 = vmatprep.subr.mxu0 0.0
    %52 = vmatpush1.msra.mxu0 0.0
    %53 = vmatprep.subr.mxu0 0.0
    %54 = vmatpush1.msra.mxu0 0.0
    %55 = vmatprep.subr.mxu0 0.0
    %56 = vmatpush1.msra.mxu0 0.0
    %57 = vmatprep.subr.mxu0 0.0
    %58 = vmatpush1.msra.mxu0 0.0
    %59 = vmatprep.subr.mxu0 0.0
    %60 = vmatpush1.msra.mxu0 0.0
    %61 = vmatprep.subr.mxu0 0.0
    %62 = vmatpush1.msra.mxu0 0.0
    %63 = vmatprep.subr.mxu0 0.0
    %64 = vmatpush1.msra.mxu0 0.0
    %65 = vmatprep.subr.mxu0 0.0
    %66 = vmatpush1.msra.mxu0 0.0
    %67 = vmatprep.subr.mxu0 0.0
    %68 = vmatpush1.msra.mxu0 0.0
    %69 = vmatprep.subr.mxu0 0.0
    %70 = vmatpush1.msra.mxu0 0.0
    %71 = vmatprep.subr.mxu0 0.0
    %72 = vmatpush1.msra.mxu0 0.0
    %73 = vmatprep.subr.mxu0 0.0
    %74 = vmatpush1.msra.mxu0 0.0
    %75 = vmatprep.subr.mxu0 0.0
    %76 = vmatpush1.msra.mxu0 0.0
    %77 = vmatprep.subr.mxu0 0.0
    %78 = vmatpush1.msra.mxu0 0.0
    %79 = vmatprep.subr.mxu0 0.0
    %80 = vmatpush1.msra.mxu0 0.0
    %81 = vmatprep.subr.mxu0 0.0
    %82 = vmatpush1.msra.mxu0 0.0
    %83 = vmatprep.subr.mxu0 0.0
    %84 = vmatpush1.msra.mxu0 0.0
    %85 = vmatprep.subr.mxu0 0.0
    %86 = vmatpush1.msra.mxu0 0.0
    %87 = vmatprep.subr.mxu0 0.0
    %88 = vmatpush1.msra.mxu0 0.0
    %89 = vmatprep.subr.mxu0 0.0
    %90 = vmatpush1.msra.mxu0 0.0
    %91 = vmatprep.subr.mxu0 0.0
    %92 = vmatpush1.msra.mxu0 0.0
    %93 = vmatprep.subr.mxu0 0.0
    %94 = vmatpush1.msra.mxu0 0.0
    %95 = vmatprep.subr.mxu0 0.0
    %96 = vmatpush1.msra.mxu0 0.0
    %97 = vmatprep.subr.mxu0 0.0
    %98 = vmatpush1.msra.mxu0 0.0
    %99 = vmatprep.subr.mxu0 0.0
    %100 = vmatpush1.msra.mxu0 0.0
    %101 = vmatprep.subr.mxu0 0.0
    %102 = vmatpush1.msra.mxu0 0.0
    %103 = vmatprep.mubr.f32.mxu0 0.0
    %104 = vmatmul.mubr.f32.gmra.mrb[0].mxu0 %v28
    %v105 = vpop.f32.mrb[0].mxu0
    %v106 = vadd.f32 0.0, %v105
    %v107 = vpop.f32.mrb[0].mxu0
    %108 = vmatprep.mubr.f32.mxu0 0.0
    %109 = vmatmul.mubr.f32.gmra.mrb[0].mxu0 %v31
    %v110 = vpop.f32.mrb[0].mxu0
    %v111 = vadd.f32 0.0, %v110
    %v112 = vpop.f32.mrb[0].mxu0
    %113 = vmatprep.mubr.f32.mxu0 0.0
    %114 = vmatmul.mubr.f32.gmra.mrb[0].mxu0 %v34
    %v115 = vpop.f32.mrb[0].mxu0
    %v116 = vadd.f32 0.0, %v115
    %v117 = vpop.f32.mrb[0].mxu0
    %118 = vmatprep.mubr.f32.mxu0 0.0
    %119 = vmatmul.mubr.f32.gmra.mrb[0].mxu0 %v37
    %v120 = vpop.f32.mrb[0].mxu0
    %v121 = vadd.f32 0.0, %v120
    %v122 = vpop.f32.mrb[0].mxu0
    %123 = vdwg.mxu0
    %v124 = vld [vmem:[%s2] sm:$0xff]
    %v125 = vld [vmem:[%s2 + $0x8] sm:$0xff]
    %v126 = vld [vmem:[%s2 + $0x10] sm:$0xff]
    %v127 = vld [vmem:[%s2 + $0x18] sm:$0xff]
    %129 = vset.pattern.permute.xlu0 0
    %130 = vperm.xlu0 %129, %v124
    %v131 = vpop.permute.xlu0 %130
    %134 = vset.pattern.permute.xlu0 0
    %135 = vperm.xlu0 %134, %v125
    %v136 = vpop.permute.xlu0 %135
    %139 = vset.pattern.permute.xlu0 0
    %140 = vperm.xlu0 %139, %v126
    %v141 = vpop.permute.xlu0 %140
    %144 = vset.pattern.permute.xlu0 0
    %145 = vperm.xlu0 %144, %v127
    %v146 = vpop.permute.xlu0 %145
    %v148 = vmul.f32 %v106, %v131
    %v149 = vmul.f32 %v111, %v136
    %v150 = vmul.f32 %v116, %v141
    %v151 = vmul.f32 %v121, %v146
    %v152 = vld [vmem:[%s3] sm:$0xff]
    %v153 = vld [vmem:[%s3 + $0x8] sm:$0xff]
    %v154 = vld [vmem:[%s3 + $0x10] sm:$0xff]
    %v155 = vld [vmem:[%s3 + $0x18] sm:$0xff]
    %157 = vset.pattern.permute.xlu0 0
    %158 = vperm.xlu0 %157, %v152
    %v159 = vpop.permute.xlu0 %158
    %162 = vset.pattern.permute.xlu0 0
    %163 = vperm.xlu0 %162, %v153
    %v164 = vpop.permute.xlu0 %163
    %167 = vset.pattern.permute.xlu0 0
    %168 = vperm.xlu0 %167, %v154
    %v169 = vpop.permute.xlu0 %168
    %172 = vset.pattern.permute.xlu0 0
    %173 = vperm.xlu0 %172, %v155
    %v174 = vpop.permute.xlu0 %173
    %v176 = vadd.f32 %v148, %v159
    %v177 = vadd.f32 %v149, %v164
    %v178 = vadd.f32 %v150, %v169
    %v179 = vadd.f32 %v151, %v174
    %v180 = vmax.f32 %v176, 0.0
    %v181 = vmax.f32 %v177, 0.0
    %v182 = vmax.f32 %v178, 0.0
    %v183 = vmax.f32 %v179, 0.0
    %184 = vst [vmem:[#allocation2] sm:$0xff] %v180
    %185 = vst [vmem:[#allocation2 + $0x8] sm:$0xff] %v181
    %186 = vst [vmem:[#allocation2 + $0x10] sm:$0xff] %v182
    %187 = vst [vmem:[#allocation2 + $0x18] sm:$0xff] %v183
    // Predicated region
    $region18: #{tpu_custom_call.1} parent=1 // pred_check
      _
    $region19: #{tpu_custom_call.1} parent=1 // pred_check_branch
      %189 = sbr.rel (0) target = $region21
    $region20: #{tpu_custom_call.1} parent=1 // pred_region
      %s191 = ssub.s32 512, 512
      %192 = vsyncadd [#allocation3], %s191
      %s193 = sshll.u32 [#allocation2], 4
      %s194 = int_to_ptr.vmem [resolvable:$true] %s193
      %199 = dma.vmem_to_hbm [thread:$0]  %s194, 512, %s4, [#allocation3], 128, 128, 8
    $region21: #{tpu_custom_call.1} parent=1 // pred_fallthru
      _
    // Predicated region
    $region22: #{tpu_custom_call.1} parent=1 // pred_check
      _
    $region23: #{tpu_custom_call.1} parent=1 // pred_check_branch
      %201 = sbr.rel (0) target = $region25
    $region24: #{tpu_custom_call.1} parent=1 // pred_region
      %202 = dma.done [#allocation3], 512
    $region25: #{tpu_custom_call.1} parent=1 // pred_fallthru
      _
    %203 = vsyncpa [#allocation3], 1

</llo_original>
